<compile_context>
chip_gen: v6e
topology: v6e:2x2x1
jax: 0.10.0
libtpu: 0.0.40
codegen_flags: <defaults>
</compile_context>

<pallas_src>
import functools
import math

import jax
import jax.numpy as jnp
from jax import lax
from jax.experimental import pallas as pl
from jax.experimental.pallas import tpu as pltpu

# Raised above the v5e/v6e/v7x default scoped limits, below v7x's 64 MiB physical.
_VMEM_LIMIT = 48 * 1024 * 1024


# ----------------------- Tiled fused Linear: y = x @ W + b ----------------------- #

def _linear_kernel(x_ref, w_ref, b_ref, *o_refs, splits, compute_dtype):
    # x_ref: (tm, K), w_ref: (K, N), b_ref: (1, N), o_refs[i]: (tm, splits[i])
    x = x_ref[...].astype(compute_dtype)
    w = w_ref[...].astype(compute_dtype)
    acc = jnp.dot(x, w, preferred_element_type=jnp.float32) + b_ref[...]
    off = 0
    for o_ref, n in zip(o_refs, splits):
        o_ref[...] = acc[:, off:off + n].astype(o_ref.dtype)
        off += n


def linear_split(x, w, b, splits, *, tm=256, compute_dtype=None):
    """y = x @ w + b with the N columns split into len(splits) separate outputs.

    Gridded over M rows ("parallel") so DMA overlaps compute; full K / N per block
    (weight+bias block indices are constant across the grid, so they are DMA'd once).
    Splitting the output here avoids strided HBM column-slice copies in the caller.
    """
    M, K = x.shape
    N = w.shape[1]
    assert sum(splits) == N
    if compute_dtype is None:
        compute_dtype = x.dtype
    tm = min(tm, M)
    grid = (pl.cdiv(M, tm),)
    itm = jnp.dtype(x.dtype).itemsize
    cost = pl.CostEstimate(
        flops=2 * M * K * N,
        transcendentals=0,
        bytes_accessed=itm * (M * K + K * N + M * N) + 4 * N,
    )
    kernel = functools.partial(_linear_kernel, splits=tuple(splits),
                               compute_dtype=compute_dtype)
    return pl.pallas_call(
        kernel,
        out_shape=tuple(jax.ShapeDtypeStruct((M, n), x.dtype) for n in splits),
        grid=grid,
        in_specs=[
            pl.BlockSpec((tm, K), lambda i: (i, 0)),
            # TODO(synk): weight/bias blocks are grid-invariant; pipeline_mode=
            # pl.Buffered(1) would halve their VMEM footprint. Tile N for very large
            # fused projections on v7x.
            pl.BlockSpec((K, N), lambda i: (0, 0)),
            pl.BlockSpec((1, N), lambda i: (0, 0)),
        ],
        out_specs=tuple(pl.BlockSpec((tm, n), lambda i: (i, 0)) for n in splits),
        compiler_params=pltpu.CompilerParams(
            dimension_semantics=("parallel",),
            vmem_limit_bytes=_VMEM_LIMIT),
        cost_estimate=cost,
    )(x, w, b.reshape(1, N))


def linear(x, w, b, *, tm=256, compute_dtype=None):
    return linear_split(x, w, b, (w.shape[1],), tm=tm, compute_dtype=compute_dtype)[0]


# ------------------------ Scaled dot-product attention ------------------------ #

def _attn_full_kernel(*refs, scale, has_mask, num_head, compute_dtype):
    """Full-Lk attention; also writes the (H, tq, Lk) attention probabilities."""
    q_ref, k_ref, v_ref = refs[0], refs[1], refs[2]
    i = 3
    m_ref = None
    if has_mask:
        m_ref = refs[i]; i += 1
    o_ref, a_ref = refs[i], refs[i + 1]

    q4 = q_ref[0]                                  # (tq, H, D)
    k4 = k_ref[0]                                  # (Lk, H, D)
    v4 = v_ref[0]                                  # (Lk, H, D)
    mz = m_ref[0] if has_mask else None            # (mH, 1|tq, Lk) int8, 1 where mask==0

    outs = []
    for h in range(num_head):                      # static unroll over heads
        qh = (q4[:, h, :].astype(jnp.float32) * scale).astype(compute_dtype)   # (tq, D)
        kh = k4[:, h, :].astype(compute_dtype)                                  # (Lk, D)
        vh = v4[:, h, :].astype(compute_dtype)                                  # (Lk, D)
        # Contract over D directly (no k transpose materialized).
        s = lax.dot_general(qh, kh, (((1,), (1,)), ((), ())),
                            preferred_element_type=jnp.float32)                 # (tq, Lk)
        if has_mask:
            mh = mz[h] if mz.shape[0] == num_head else mz[0]                    # (1|tq, Lk)
            s = jnp.where(mh != 0, jnp.float32(-1000.0), s)   # masked_fill(mask==0,-1000)
        s_max = jnp.max(s, axis=-1, keepdims=True)
        e = jnp.exp(s - s_max)
        denom = jnp.sum(e, axis=-1, keepdims=True)
        attn = e / denom                     # exact divide: attn is returned to caller
        a_ref[0, h, :, :] = attn.astype(a_ref.dtype)
        outs.append(jnp.dot(attn.astype(compute_dtype), vh,
                            preferred_element_type=jnp.float32))                # (tq, D)
    # Lane-dense (tq, H*D) store into the (B, Lq, hidden) output slab.
    o_ref[0] = jnp.concatenate(outs, axis=-1).astype(o_ref.dtype)


def _attn_flash_kernel(*refs, scale, has_mask, num_head, compute_dtype):
    """Online-softmax (flash) attention over KV tiles; context output only."""
    q_ref, k_ref, v_ref = refs[0], refs[1], refs[2]
    i = 3
    m_ref = None
    if has_mask:
        m_ref = refs[i]; i += 1
    o_ref = refs[i]
    m_sc, l_sc, acc_sc = refs[i + 1], refs[i + 2], refs[i + 3]

    ki = pl.program_id(2)

    @pl.when(ki == 0)
    def _init():
        m_sc[...] = jnp.full_like(m_sc, -jnp.inf)
        l_sc[...] = jnp.zeros_like(l_sc)
        acc_sc[...] = jnp.zeros_like(acc_sc)

    q4 = q_ref[0]                                  # (tq, H, D)
    k4 = k_ref[0]                                  # (tk, H, D)
    v4 = v_ref[0]                                  # (tk, H, D)
    mz = m_ref[0] if has_mask else None            # (mH, 1|tq, tk)

    for h in range(num_head):                      # static unroll over heads
        qh = (q4[:, h, :].astype(jnp.float32) * scale).astype(compute_dtype)
        kh = k4[:, h, :].astype(compute_dtype)
        vh = v4[:, h, :].astype(compute_dtype)
        s = lax.dot_general(qh, kh, (((1,), (1,)), ((), ())),
                            preferred_element_type=jnp.float32)     # (tq, tk)
        if has_mask:
            mh = mz[h] if mz.shape[0] == num_head else mz[0]
            s = jnp.where(mh != 0, jnp.float32(-1000.0), s)
        m_prev = m_sc[h]                                             # (tq, 1)
        m_new = jnp.maximum(m_prev, jnp.max(s, axis=-1, keepdims=True))
        alpha = jnp.exp(m_prev - m_new)
        p = jnp.exp(s - m_new)
        l_sc[h] = alpha * l_sc[h] + jnp.sum(p, axis=-1, keepdims=True)
        acc_sc[h] = alpha * acc_sc[h] + jnp.dot(
            p.astype(compute_dtype), vh, preferred_element_type=jnp.float32)
        m_sc[h] = m_new

    @pl.when(ki == pl.num_programs(2) - 1)
    def _finalize():
        outs = []
        for h in range(num_head):
            # Approx reciprocal is fine here: probabilities are NOT returned.
            outs.append(acc_sc[h] * pl.reciprocal(l_sc[h], approx=True))
        o_ref[0] = jnp.concatenate(outs, axis=-1).astype(o_ref.dtype)


def scaled_dot_product_attention(q, k, v, mask_is_zero=None, *, tq=128, tk=128,
                                 return_attn=True, compute_dtype=None,
                                 attn_dtype=None):
    """q: (B, Lq, H, D); k, v: (B, Lk, H, D)  (head-split layout, NO (B,H,L,D) transpose).

    mask_is_zero: int8 (B, 1|H, 1|Lq, Lk) with 1 where the original mask == 0, or None.
    Returns (ctx, attn): ctx is (B, Lq, H*D) (lane-dense, ready for the output
    projection without any transpose); attn is (B, H, Lq, Lk) or None.
    """
    B, Lq, H, D = q.shape
    Lk = k.shape[1]
    hidden = H * D
    if compute_dtype is None:
        compute_dtype = q.dtype
    if attn_dtype is None:
        attn_dtype = q.dtype        # pass jnp.bfloat16 if attn is inspection-only
    scale = 1.0 / math.sqrt(D)
    tq = min(tq, Lq)
    has_mask = mask_is_zero is not None
    itm = jnp.dtype(q.dtype).itemsize
    io_bytes = itm * (2 * B * Lq * hidden + 2 * B * Lk * hidden)
    mask_bytes = int(mask_is_zero.size) if has_mask else 0

    if return_attn:
        # The full attention matrix must be returned, so Lk stays resident per step.
        # TODO(synk): for very long Lk on v7x (64 MiB VMEM) add a head-group grid axis.
        grid = (B, pl.cdiv(Lq, tq))
        in_specs = [
            pl.BlockSpec((1, tq, H, D), lambda b, qi: (b, qi, 0, 0)),
            pl.BlockSpec((1, Lk, H, D), lambda b, qi: (b, 0, 0, 0)),
            pl.BlockSpec((1, Lk, H, D), lambda b, qi: (b, 0, 0, 0)),
        ]
        operands = [q, k, v]
        if has_mask:
            _, mH, mLq, mLk = mask_is_zero.shape
            if mLq == Lq:   # per-query-row mask: tile it along Lq together with q
                in_specs.append(pl.BlockSpec((1, mH, tq, mLk),
                                             lambda b, qi: (b, 0, qi, 0)))
            else:           # broadcast mask rows: one block reused for every tile/head
                in_specs.append(pl.BlockSpec((1, mH, mLq, mLk),
                                             lambda b, qi: (b, 0, 0, 0)))
            operands.append(mask_is_zero)
        out_shape = (jax.ShapeDtypeStruct((B, Lq, hidden), q.dtype),
                     jax.ShapeDtypeStruct((B, H, Lq, Lk), attn_dtype))
        out_specs = (pl.BlockSpec((1, tq, hidden), lambda b, qi: (b, qi, 0)),
                     pl.BlockSpec((1, H, tq, Lk), lambda b, qi: (b, 0, qi, 0)))
        cost = pl.CostEstimate(
            flops=4 * B * H * Lq * Lk * D + 6 * B * H * Lq * Lk,
            transcendentals=B * H * Lq * Lk,
            bytes_accessed=io_bytes + jnp.dtype(attn_dtype).itemsize * B * H * Lq * Lk
            + mask_bytes)
        kernel = functools.partial(_attn_full_kernel, scale=scale, has_mask=has_mask,
                                   num_head=H, compute_dtype=compute_dtype)
        ctx, attn = pl.pallas_call(
            kernel,
            out_shape=out_shape,
            grid=grid,
            in_specs=in_specs,
            out_specs=out_specs,
            compiler_params=pltpu.CompilerParams(
                dimension_semantics=("parallel", "parallel"),
                vmem_limit_bytes=_VMEM_LIMIT),
            cost_estimate=cost,
        )(*operands)
        return ctx, attn

    # return_attn=False: flash-style online softmax over KV tiles (O(tk) residency).
    tk = min(tk, Lk)
    if Lk % tk != 0:
        tk = Lk                      # keep padded-KV columns out of the softmax
    grid = (B, pl.cdiv(Lq, tq), Lk // tk)
    in_specs = [
        pl.BlockSpec((1, tq, H, D), lambda b, qi, ki: (b, qi, 0, 0)),
        pl.BlockSpec((1, tk, H, D), lambda b, qi, ki: (b, ki, 0, 0)),
        pl.BlockSpec((1, tk, H, D), lambda b, qi, ki: (b, ki, 0, 0)),
    ]
    operands = [q, k, v]
    if has_mask:
        _, mH, mLq, mLk = mask_is_zero.shape
        if mLq == Lq:
            in_specs.append(pl.BlockSpec((1, mH, tq, tk),
                                         lambda b, qi, ki: (b, 0, qi, ki)))
        else:
            in_specs.append(pl.BlockSpec((1, mH, mLq, tk),
                                         lambda b, qi, ki: (b, 0, 0, ki)))
        operands.append(mask_is_zero)
    out_shape = jax.ShapeDtypeStruct((B, Lq, hidden), q.dtype)
    out_specs = pl.BlockSpec((1, tq, hidden), lambda b, qi, ki: (b, qi, 0))
    cost = pl.CostEstimate(
        flops=4 * B * H * Lq * Lk * D + 8 * B * H * Lq * Lk,
        transcendentals=B * H * Lq * Lk,
        bytes_accessed=io_bytes + mask_bytes)
    kernel = functools.partial(_attn_flash_kernel, scale=scale, has_mask=has_mask,
                               num_head=H, compute_dtype=compute_dtype)
    ctx = pl.pallas_call(
        kernel,
        out_shape=out_shape,
        grid=grid,
        in_specs=in_specs,
        out_specs=out_specs,
        scratch_shapes=[pltpu.VMEM((H, tq, 1), jnp.float32),   # running max
                        pltpu.VMEM((H, tq, 1), jnp.float32),   # running denom
                        pltpu.VMEM((H, tq, D), jnp.float32)],  # running accumulator
        compiler_params=pltpu.CompilerParams(
            dimension_semantics=("parallel", "parallel", "arbitrary"),
            vmem_limit_bytes=_VMEM_LIMIT),
        cost_estimate=cost,
    )(*operands)
    return ctx, None


# ----------------------------- MultiHeadAttention ----------------------------- #

def init_mha_params(key, out_size, hidden_size):
    ks = jax.random.split(key, 8)
    scale_in = 1.0 / math.sqrt(out_size)
    scale_h = 1.0 / math.sqrt(hidden_size)
    # weights stored as (in_features, out_features) so forward is x @ W + b
    p = {
        "wq": jax.random.uniform(ks[0], (out_size, hidden_size), jnp.float32, -scale_in, scale_in),
        "bq": jax.random.uniform(ks[1], (hidden_size,), jnp.float32, -scale_in, scale_in),
        "wk": jax.random.uniform(ks[2], (out_size, hidden_size), jnp.float32, -scale_in, scale_in),
        "bk": jax.random.uniform(ks[3], (hidden_size,), jnp.float32, -scale_in, scale_in),
        "wv": jax.random.uniform(ks[4], (out_size, hidden_size), jnp.float32, -scale_in, scale_in),
        "bv": jax.random.uniform(ks[5], (hidden_size,), jnp.float32, -scale_in, scale_in),
        "wp": jax.random.uniform(ks[6], (hidden_size, out_size), jnp.float32, -scale_h, scale_h),
        "bp": jax.random.uniform(ks[7], (out_size,), jnp.float32, -scale_h, scale_h),
    }
    # Fused projection weights cached at init (hoisted out of the forward path).
    p["wqkv"] = jnp.concatenate([p["wq"], p["wk"], p["wv"]], axis=1)
    p["bqkv"] = jnp.concatenate([p["bq"], p["bk"], p["bv"]])
    p["wkv"] = jnp.concatenate([p["wk"], p["wv"]], axis=1)
    p["bkv"] = jnp.concatenate([p["bk"], p["bv"]])
    return p


def multi_head_attention(params, query, keys, values, mask=None, num_head=8,
                         return_attn=True, compute_dtype=None,
                         is_self_attention=None, is_shared_kv=None):
    """Forward pass of the PyTorch MultiHeadAttention module.

    compute_dtype: MXU operand dtype (e.g. jnp.bfloat16); accumulation stays f32.
    is_self_attention / is_shared_kv: explicit fusion flags (default: object identity).
    """
    B, Lq, out_size = query.shape
    Lk = keys.shape[1]
    hidden = params["wq"].shape[1]
    D = hidden // num_head

    if is_self_attention is None:
        is_self_attention = (query is keys) and (keys is values)
    if is_shared_kv is None:
        is_shared_kv = keys is values

    qm = query.reshape(B * Lq, out_size)
    km = keys.reshape(B * Lk, out_size)

    if is_self_attention:
        # One fused GEMM for Q, K and V; outputs come back already separated.
        q2, k2, v2 = linear_split(qm, params["wqkv"], params["bqkv"],
                                  (hidden, hidden, hidden), compute_dtype=compute_dtype)
    elif is_shared_kv:
        q2 = linear(qm, params["wq"], params["bq"], compute_dtype=compute_dtype)
        k2, v2 = linear_split(km, params["wkv"], params["bkv"], (hidden, hidden),
                              compute_dtype=compute_dtype)
    else:
        vm = values.reshape(B * Lk, out_size)
        q2 = linear(qm, params["wq"], params["bq"], compute_dtype=compute_dtype)
        k2 = linear(km, params["wk"], params["bk"], compute_dtype=compute_dtype)
        v2 = linear(vm, params["wv"], params["bv"], compute_dtype=compute_dtype)

    # Head split WITHOUT an HBM transpose: (B*L, hidden) -> (B, L, H, D) is free.
    q = q2.reshape(B, Lq, num_head, D)
    k = k2.reshape(B, Lk, num_head, D)
    v = v2.reshape(B, Lk, num_head, D)

    mask_is_zero = None
    if mask is not None:
        m = mask
        if m.ndim < 4:          # MultiHeadAttention.forward: mask.unsqueeze(1)
            m = m[:, None]
        if m.ndim < 4:          # ScaledDotProductAttention.forward: mask.unsqueeze(-2)
            m = m[..., None, :]
        # (mask == 0) kept compact (int8, natural broadcast shape) — NOT expanded over
        # heads / query rows in HBM.  Only the batch dim is materialized to B.
        mz = (m == 0).astype(jnp.int8)
        mask_is_zero = jnp.broadcast_to(mz, (B,) + mz.shape[1:])

    ctx, attn = scaled_dot_product_attention(
        q, k, v, mask_is_zero, return_attn=return_attn, compute_dtype=compute_dtype)

    # ctx is already (B, Lq, hidden) — no transpose before the output projection.
    proj = linear(ctx.reshape(B * Lq, hidden), params["wp"], params["bp"],
                  compute_dtype=compute_dtype).reshape(B, Lq, out_size)
    return proj, attn


# ----------------------------- pure-JAX reference ----------------------------- #

def mha_reference(params, query, keys, values, mask=None, num_head=8):
    B, Lq, _ = query.shape
    Lk = keys.shape[1]
    hidden = params["wq"].shape[1]
    D = hidden // num_head
    q = (query @ params["wq"] + params["bq"]).reshape(B, Lq, num_head, D).transpose(0, 2, 1, 3)
    k = (keys @ params["wk"] + params["bk"]).reshape(B, Lk, num_head, D).transpose(0, 2, 1, 3)
    v = (values @ params["wv"] + params["bv"]).reshape(B, Lk, num_head, D).transpose(0, 2, 1, 3)
    s = jnp.einsum("bhqd,bhkd->bhqk", q, k) / math.sqrt(D)
    if mask is not None:
        m = mask
        if m.ndim < 4:
            m = m[:, None]
        if m.ndim < 4:
            m = m[..., None, :]
        s = jnp.where(m == 0, jnp.float32(-1000.0), s)
    attn = jax.nn.softmax(s, axis=-1)
    o = jnp.einsum("bhqk,bhkd->bhqd", attn, v)
    o = o.transpose(0, 2, 1, 3).reshape(B, Lq, hidden)
    return o @ params["wp"] + params["bp"], attn


if __name__ == "__main__":
    B, L, out_size, num_head = 2, 8, 32, 8
    hidden_size = 64                       # head_dim = 8

    root = jax.random.PRNGKey(0)
    kp, kq, kk, kv = jax.random.split(root, 4)
    params = init_mha_params(kp, out_size, hidden_size)

    query = jax.random.normal(kq, (B, L, out_size), jnp.float32)
    keys = jax.random.normal(kk, (B, L, out_size), jnp.float32)
    values = jax.random.normal(kv, (B, L, out_size), jnp.float32)
    mask = jnp.ones((B, L), jnp.float32).at[1, 6:].set(0.0)

    TOL_F32 = dict(atol=2e-2, rtol=2e-2)
    TOL_BF16 = dict(atol=5e-2, rtol=5e-2)   # bf16 MXU + approx reciprocal path

    # 1) self-attention (fused QKV GEMM), no mask, f32 compute, attn returned
    out_sa, attn_sa = multi_head_attention(params, query, query, query,
                                           mask=None, num_head=num_head)
    jax.block_until_ready((out_sa, attn_sa))
    ref_o, ref_a = mha_reference(params, query, query, query, num_head=num_head)
    assert jnp.allclose(out_sa, ref_o, **TOL_F32)
    assert jnp.allclose(attn_sa, ref_a, **TOL_F32)

    # 2) distinct query / keys / values with a (B, Lk) padding mask, attn returned
    out_x, attn_x = multi_head_attention(params, query, keys, values,
                                         mask=mask, num_head=num_head)
    jax.block_until_ready((out_x, attn_x))
    ref_o2, ref_a2 = mha_reference(params, query, keys, values, mask=mask,
                                   num_head=num_head)
    assert jnp.allclose(out_x, ref_o2, **TOL_F32)
    assert jnp.allclose(attn_x, ref_a2, **TOL_F32)

    # 3) shared K/V source (fused KV GEMM) + flash (no attn writeback) + bf16 MXU + mask
    out_kv, attn_none = multi_head_attention(params, query, keys, keys,
                                             mask=mask, num_head=num_head,
                                             return_attn=False,
                                             compute_dtype=jnp.bfloat16)
    jax.block_until_ready(out_kv)
    assert attn_none is None
    ref_o3, _ = mha_reference(params, query, keys, keys, mask=mask,
                              num_head=num_head)
    assert jnp.allclose(out_kv, ref_o3, **TOL_BF16)

    print("KERNEL_OK")
</pallas_src>

<mosaic_0001>
module attributes {stable_mosaic.version = 11 : i64} {
  func.func @_linear_kernel(%arg0: i32, %arg1: memref<16x32xf32, #tpu.memory_space<vmem>>, %arg2: memref<32x192xf32, #tpu.memory_space<vmem>>, %arg3: memref<1x192xf32, #tpu.memory_space<vmem>>, %arg4: memref<16x64xf32, #tpu.memory_space<vmem>>, %arg5: memref<16x64xf32, #tpu.memory_space<vmem>>, %arg6: memref<16x64xf32, #tpu.memory_space<vmem>>) attributes {dimension_semantics = [#tpu.dimension_semantics<parallel>], iteration_bounds = array<i64: 1>, scalar_prefetch = 0 : i64, scratch_operands = 0 : i64, tpu.core_type = #tpu.core_type<tc>, window_params = [{transform_indices = @transform_0, window_bounds = array<i64: 16, 32>}, {pipeline_mode = #tpu.pipeline_mode<synchronous>, transform_indices = @transform_1, window_bounds = array<i64: 32, 192>}, {pipeline_mode = #tpu.pipeline_mode<synchronous>, transform_indices = @transform_2, window_bounds = array<i64: 1, 192>}, {transform_indices = @transform_3, window_bounds = array<i64: 16, 64>}, {transform_indices = @transform_4, window_bounds = array<i64: 16, 64>}, {transform_indices = @transform_5, window_bounds = array<i64: 16, 64>}]} {
    %c0 = arith.constant 0 : index
    %c0_0 = arith.constant 0 : index
    %0 = vector.load %arg1[%c0, %c0_0] : memref<16x32xf32, #tpu.memory_space<vmem>>, vector<16x32xf32>
    %c0_1 = arith.constant 0 : index
    %c0_2 = arith.constant 0 : index
    %1 = vector.load %arg2[%c0_1, %c0_2] : memref<32x192xf32, #tpu.memory_space<vmem>>, vector<32x192xf32>
    %cst = arith.constant dense<0.000000e+00> : vector<16x192xf32>
    %2 = tpu.matmul %0, %1, %cst {dimension_numbers = #tpu.dot_dimension_numbers<[1], [0], [0], [1], [0, 0, 1, 1], [], []>} : vector<16x32xf32>, vector<32x192xf32>, vector<16x192xf32> -> vector<16x192xf32>
    %c0_3 = arith.constant 0 : index
    %c0_4 = arith.constant 0 : index
    %3 = vector.load %arg3[%c0_3, %c0_4] : memref<1x192xf32, #tpu.memory_space<vmem>>, vector<1x192xf32>
    %4 = vector.broadcast %3 : vector<1x192xf32> to vector<16x192xf32>
    %5 = arith.addf %2, %4 : vector<16x192xf32>
    %6 = vector.extract_strided_slice %5 {offsets = [0, 0], sizes = [16, 64], strides = [1, 1]} : vector<16x192xf32> to vector<16x64xf32>
    %c0_5 = arith.constant 0 : index
    %c0_6 = arith.constant 0 : index
    %7 = vector.load %arg4[%c0_5, %c0_6] : memref<16x64xf32, #tpu.memory_space<vmem>>, vector<16x64xf32>
    tpu.vector_store %arg4[%c0_5, %c0_6], %6 {strides = array<i32>} : memref<16x64xf32, #tpu.memory_space<vmem>>, vector<16x64xf32>,
    %8 = vector.extract_strided_slice %5 {offsets = [0, 64], sizes = [16, 64], strides = [1, 1]} : vector<16x192xf32> to vector<16x64xf32>
    %c0_7 = arith.constant 0 : index
    %c0_8 = arith.constant 0 : index
    %9 = vector.load %arg5[%c0_7, %c0_8] : memref<16x64xf32, #tpu.memory_space<vmem>>, vector<16x64xf32>
    tpu.vector_store %arg5[%c0_7, %c0_8], %8 {strides = array<i32>} : memref<16x64xf32, #tpu.memory_space<vmem>>, vector<16x64xf32>,
    %10 = vector.extract_strided_slice %5 {offsets = [0, 128], sizes = [16, 64], strides = [1, 1]} : vector<16x192xf32> to vector<16x64xf32>
    %c0_9 = arith.constant 0 : index
    %c0_10 = arith.constant 0 : index
    %11 = vector.load %arg6[%c0_9, %c0_10] : memref<16x64xf32, #tpu.memory_space<vmem>>, vector<16x64xf32>
    tpu.vector_store %arg6[%c0_9, %c0_10], %10 {strides = array<i32>} : memref<16x64xf32, #tpu.memory_space<vmem>>, vector<16x64xf32>,
    return
  }
  func.func @transform_0(%arg0: i32) -> (i32, i32) {
    %c0_i32 = arith.constant 0 : i32
    %c0_i32_0 = arith.constant 0 : i32
    return %arg0, %c0_i32 : i32, i32
  }
  func.func @transform_1(%arg0: i32) -> (i32, i32) {
    %c0_i32 = arith.constant 0 : i32
    %c0_i32_0 = arith.constant 0 : i32
    %c0_i32_1 = arith.constant 0 : i32
    return %c0_i32, %c0_i32_0 : i32, i32
  }
  func.func @transform_2(%arg0: i32) -> (i32, i32) {
    %c0_i32 = arith.constant 0 : i32
    %c0_i32_0 = arith.constant 0 : i32
    %c0_i32_1 = arith.constant 0 : i32
    return %c0_i32, %c0_i32_0 : i32, i32
  }
  func.func @transform_3(%arg0: i32) -> (i32, i32) {
    %c0_i32 = arith.constant 0 : i32
    %c0_i32_0 = arith.constant 0 : i32
    return %arg0, %c0_i32 : i32, i32
  }
  func.func @transform_4(%arg0: i32) -> (i32, i32) {
    %c0_i32 = arith.constant 0 : i32
    %c0_i32_0 = arith.constant 0 : i32
    return %arg0, %c0_i32 : i32, i32
  }
  func.func @transform_5(%arg0: i32) -> (i32, i32) {
    %c0_i32 = arith.constant 0 : i32
    %c0_i32_0 = arith.constant 0 : i32
    return %arg0, %c0_i32 : i32, i32
  }
}

</mosaic_0001>

<llo_original>
// kernel: tpu_custom_call.1
$region0: #{tpu_custom_call.1}
  #allocation0 [shape = 'u32[]', space=smem, size = 0x4, offset = 0x4, fixed_abs, tag = 'smem constant byte address 0x4 - core index']
  #allocation1 [shape = 'u32[144,128]{1,0:T(1,128)}', space=vmem, size = 0x12000, scoped, tag = 'internal scratch']
  %s0 = inlined_call_operand.hbm [shape: f32[16,32], index: 0, kind: input, shape index: {}]
  %s1 = inlined_call_operand.hbm [shape: f32[32,192], index: 1, kind: input, shape index: {}]
  %s2 = inlined_call_operand.vmem [shape: f32[1,192], index: 2, kind: input, shape index: {}]
  %s3 = inlined_call_operand.hbm [shape: f32[16,64], index: 3, kind: output, shape index: {0}]
  %s4 = inlined_call_operand.hbm [shape: f32[16,64], index: 4, kind: output, shape index: {1}]
  %s5 = inlined_call_operand.hbm [shape: f32[16,64], index: 5, kind: output, shape index: {2}]
  %6 = xla_tuple %s3, %s4, %s5
  %s7 = sld [smem:[#allocation0]]
  $region46: #{tpu_custom_call.1} parent=0
    _
  %s9 = ssub.s32 1, %s7
  %s10 = scalar_select 0, %s9, %s7
  $region1: #{tpu_custom_call.1} parent=0
    #allocation2 [shape = 'u8[8192]{0}', space=vmem, size = 0x2000, scoped, tag = 'input window, operand 0, single buffered']
    #allocation3 [shape = 's32[1]{0}', space=sflag, size = 0x4, scoped, tag = 'scoped memory for tpu_custom_call.1']
    #allocation4 [shape = 's32[1]{0}', space=sflag, size = 0x4, scoped, tag = 'scoped memory for tpu_custom_call.1']
    #allocation5 [shape = 'u8[32768]{0}', space=vmem, size = 0x8000, scoped, tag = 'input window, operand 1, single buffered']
    #allocation6 [shape = 's32[1]{0}', space=sflag, size = 0x4, scoped, tag = 'scoped memory for tpu_custom_call.1']
    #allocation7 [shape = 'u8[8192]{0}', space=vmem, size = 0x2000, scoped, tag = 'output window, operand 0, single buffered']
    #allocation8 [shape = 'u8[8192]{0}', space=vmem, size = 0x2000, scoped, tag = 'output window, operand 1, single buffered']
    #allocation9 [shape = 's32[1]{0}', space=sflag, size = 0x4, scoped, tag = 'scoped memory for tpu_custom_call.1']
    #allocation10 [shape = 'u8[8192]{0}', space=vmem, size = 0x2000, scoped, tag = 'output window, operand 2, single buffered']
    %11 = vsyncpa [#allocation3], 0
    %12 = vsyncpa [#allocation6], 0
    %13 = vsyncpa [#allocation4], 0
    %14 = vsyncpa [#allocation9], 0
    // Predicated region
    $region2: #{tpu_custom_call.1} parent=1 // pred_check
      _
    $region3: #{tpu_custom_call.1} parent=1 // pred_check_branch
      %16 = sbr.rel (0) target = $region5
    $region4: #{tpu_custom_call.1} parent=1 // pred_region
      %s18 = ssub.s32 256, 256
      %19 = vsyncadd [#allocation3], %s18
      %s20 = sshll.u32 [#allocation2], 4
      %s21 = int_to_ptr.vmem [resolvable:$true] %s20
      %26 = dma.hbm_to_vmem [thread:$0]  %s0, 256, %s21, [#allocation3], 128, 128, 8
    $region5: #{tpu_custom_call.1} parent=1 // pred_fallthru
      _
    // Predicated region
    $region6: #{tpu_custom_call.1} parent=1 // pred_check
      _
    $region7: #{tpu_custom_call.1} parent=1 // pred_check_branch
      %28 = sbr.rel (0) target = $region9
    $region8: #{tpu_custom_call.1} parent=1 // pred_region
      %s30 = ssub.s32 1024, 1024
      %31 = vsyncadd [#allocation6], %s30
      %s32 = sshll.u32 [#allocation5], 4
      %s33 = int_to_ptr.vmem [resolvable:$true] %s32
      %38 = dma.hbm_to_vmem [thread:$0]  %s1, 1024, %s33, [#allocation6], 256, 256, 16
    $region9: #{tpu_custom_call.1} parent=1 // pred_fallthru
      _
    // Predicated region
    $region10: #{tpu_custom_call.1} parent=1 // pred_check
      _
    $region11: #{tpu_custom_call.1} parent=1 // pred_check_branch
      %40 = sbr.rel (0) target = $region13
    $region12: #{tpu_custom_call.1} parent=1 // pred_region
      _
    $region13: #{tpu_custom_call.1} parent=1 // pred_fallthru
      _
    // Predicated region
    $region14: #{tpu_custom_call.1} parent=1 // pred_check
      _
    $region15: #{tpu_custom_call.1} parent=1 // pred_check_branch
      %42 = sbr.rel (0) target = $region17
    $region16: #{tpu_custom_call.1} parent=1 // pred_region
      %43 = dma.done [#allocation3], 256
    $region17: #{tpu_custom_call.1} parent=1 // pred_fallthru
      _
    // Predicated region
    $region18: #{tpu_custom_call.1} parent=1 // pred_check
      _
    $region19: #{tpu_custom_call.1} parent=1 // pred_check_branch
      %45 = sbr.rel (0) target = $region21
    $region20: #{tpu_custom_call.1} parent=1 // pred_region
      %46 = dma.done [#allocation6], 1024
    $region21: #{tpu_custom_call.1} parent=1 // pred_fallthru
      _
    %v47 = vld [vmem:[#allocation2] sm:$0xff]
    %v48 = vld [vmem:[#allocation2 + $0x8] sm:$0xff]
    %v49 = vld [vmem:[#allocation5] sm:$0xff]
    %v50 = vld [vmem:[#allocation5 + $0x8] sm:$0xff]
    %v51 = vld [vmem:[#allocation5 + $0x10] sm:$0xff]
    %v52 = vld [vmem:[#allocation5 + $0x18] sm:$0xff]
    %v53 = vld [vmem:[#allocation5 + $0x20] sm:$0xff]
    %v54 = vld [vmem:[#allocation5 + $0x28] sm:$0xff]
    %v55 = vld [vmem:[#allocation5 + $0x30] sm:$0xff]
    %v56 = vld [vmem:[#allocation5 + $0x38] sm:$0xff]
    %v57 = vld [vmem:[%s2] sm:$0x3]
    %v59 = vlaneseq
    %v60 = vshrl.u32 %v59, 7
    %v61 = vsub.s32 0, %v60
    %v62 = vrot.slane %v57, %v61
    %v63 = vlaneseq
    %v64 = vshrl.u32 %v63, 7
    %v65 = vsub.s32 1, %v64
    %v66 = vrot.slane %v57, %v65
    %vm69 = vcmask 261120
    %v71 = vsel %vm69, %v47, 0
    %v74 = vsel %vm69, %v48, 0
    %76 = vmatprep.subr.mxu0 0.0
    %77 = vmatpush1.msra.mxu0 0.0
    %78 = vmatprep.subr.mxu0 0.0
    %79 = vmatpush1.msra.mxu0 0.0
    %80 = vmatprep.subr.mxu0 0.0
    %81 = vmatpush1.msra.mxu0 0.0
    %82 = vmatprep.subr.mxu0 0.0
    %83 = vmatpush1.msra.mxu0 0.0
    %84 = vmatprep.subr.mxu0 0.0
    %85 = vmatpush1.msra.mxu0 0.0
    %86 = vmatprep.subr.mxu0 0.0
    %87 = vmatpush1.msra.mxu0 0.0
    %88 = vmatprep.subr.mxu0 0.0
    %89 = vmatpush1.msra.mxu0 0.0
    %90 = vmatprep.subr.mxu0 0.0
    %91 = vmatpush1.msra.mxu0 0.0
    %92 = vmatprep.subr.mxu0 0.0
    %93 = vmatpush1.msra.mxu0 0.0
    %94 = vmatprep.subr.mxu0 0.0
    %95 = vmatpush1.msra.mxu0 0.0
    %96 = vmatprep.subr.mxu0 0.0
    %97 = vmatpush1.msra.mxu0 0.0
    %98 = vmatprep.subr.mxu0 0.0
    %99 = vmatpush1.msra.mxu0 0.0
    %100 = vmatprep.subr.mxu0 %v56
    %101 = vmatpush1.msra.mxu0 %v55
    %102 = vmatprep.subr.mxu0 %v54
    %103 = vmatpush1.msra.mxu0 %v53
    %104 = vmatprep.subr.mxu0 %v52
    %105 = vmatpush1.msra.mxu0 %v51
    %106 = vmatprep.subr.mxu0 %v50
    %107 = vmatpush1.msra.mxu0 %v49
    %108 = vmatprep.subr.mxu0 0.0
    %109 = vmatpush2.msra.mxu0 0.0
    %110 = vmatprep.subr.mxu0 0.0
    %111 = vmatpush2.msra.mxu0 0.0
    %112 = vmatprep.subr.mxu0 0.0
    %113 = vmatpush2.msra.mxu0 0.0
    %114 = vmatprep.subr.mxu0 0.0
    %115 = vmatpush2.msra.mxu0 0.0
    %116 = vmatprep.subr.mxu0 0.0
    %117 = vmatpush2.msra.mxu0 0.0
    %118 = vmatprep.subr.mxu0 0.0
    %119 = vmatpush2.msra.mxu0 0.0
    %120 = vmatprep.subr.mxu0 0.0
    %121 = vmatpush2.msra.mxu0 0.0
    %122 = vmatprep.subr.mxu0 0.0
    %123 = vmatpush2.msra.mxu0 0.0
    %124 = vmatprep.subr.mxu0 0.0
    %125 = vmatpush2.msra.mxu0 0.0
    %126 = vmatprep.subr.mxu0 0.0
    %127 = vmatpush2.msra.mxu0 0.0
    %128 = vmatprep.subr.mxu0 0.0
    %129 = vmatpush2.msra.mxu0 0.0
    %130 = vmatprep.subr.mxu0 0.0
    %131 = vmatpush2.msra.mxu0 0.0
    %132 = vmatprep.subr.mxu0 0.0
    %133 = vmatpush2.msra.mxu0 0.0
    %134 = vmatprep.subr.mxu0 0.0
    %135 = vmatpush2.msra.mxu0 0.0
    %136 = vmatprep.subr.mxu0 0.0
    %137 = vmatpush2.msra.mxu0 0.0
    %138 = vmatprep.subr.mxu0 0.0
    %139 = vmatpush2.msra.mxu0 0.0
    %140 = vmatprep.mubr.f32.mxu0 0.0
    %141 = vmatmul.mubr.f32.gmra.mxu0 %v71
    %v142 = vpop.f32.mrf.mxu0
    %v143 = vadd.f32 %v62, %v142
    %v144 = vpop.f32.mrf.mxu0
    %v145 = vadd.f32 %v66, %v144
    %146 = vmatprep.mubr.f32.mxu0 0.0
    %147 = vmatmul.mubr.f32.gmra.mxu0 %v74
    %v148 = vpop.f32.mrf.mxu0
    %v149 = vadd.f32 %v62, %v148
    %v150 = vpop.f32.mrf.mxu0
    %v151 = vadd.f32 %v66, %v150
    %152 = vdwg.mxu0
    %vm153 = vcmask 523264
    %154 = vst.msk [vmem:[#allocation7] sm:$0xff] %vm153, %v143
    %155 = vst.msk [vmem:[#allocation7 + $0x8] sm:$0xff] %vm153, %v149
    %158 = vrot.lane.b32.xlu0 %v143, 64
    %v159 = vpop.permute.xlu0 %158
    %160 = vrot.lane.b32.xlu0 %v149, 64
    %v161 = vpop.permute.xlu0 %160
    %164 = vst.msk [vmem:[#allocation8] sm:$0xff] %vm153, %v159
    %165 = vst.msk [vmem:[#allocation8 + $0x8] sm:$0xff] %vm153, %v161
    %166 = vst.msk [vmem:[#allocation10] sm:$0xff] %vm153, %v145
    %167 = vst.msk [vmem:[#allocation10 + $0x8] sm:$0xff] %vm153, %v151
    // Predicated region
    $region22: #{tpu_custom_call.1} parent=1 // pred_check
      _
    $region23: #{tpu_custom_call.1} parent=1 // pred_check_branch
      %169 = sbr.rel (0) target = $region25
    $region24: #{tpu_custom_call.1} parent=1 // pred_region
      %s171 = ssub.s32 256, 256
      %172 = vsyncadd [#allocation4], %s171
      %s173 = sshll.u32 [#allocation7], 4
      %s174 = int_to_ptr.vmem [resolvable:$true] %s173
      %179 = dma.vmem_to_hbm [thread:$0]  %s174, 256, %s3, [#allocation4], 128, 128, 8
    $region25: #{tpu_custom_call.1} parent=1 // pred_fallthru
      _
    // Predicated region
    $region26: #{tpu_custom_call.1} parent=1 // pred_check
      _
    $region27: #{tpu_custom_call.1} parent=1 // pred_check_branch
      %181 = sbr.rel (0) target = $region29
    $region28: #{tpu_custom_call.1} parent=1 // pred_region
      %s183 = ssub.s32 256, 256
      %184 = vsyncadd [#allocation9], %s183
      %s185 = sshll.u32 [#allocation8], 4
      %s186 = int_to_ptr.vmem [resolvable:$true] %s185
      %191 = dma.vmem_to_hbm [thread:$0]  %s186, 256, %s4, [#allocation9], 128, 128, 8
    $region29: #{tpu_custom_call.1} parent=1 // pred_fallthru
      _
    // Predicated region
    $region30: #{tpu_custom_call.1} parent=1 // pred_check
      _
    $region31: #{tpu_custom_call.1} parent=1 // pred_check_branch
      %193 = sbr.rel (0) target = $region33
    $region32: #{tpu_custom_call.1} parent=1 // pred_region
      %s195 = ssub.s32 256, 256
      %196 = vsyncadd [#allocation9], %s195
      %s197 = sshll.u32 [#allocation10], 4
      %s198 = int_to_ptr.vmem [resolvable:$true] %s197
      %203 = dma.vmem_to_hbm [thread:$0]  %s198, 256, %s5, [#allocation9], 128, 128, 8
    $region33: #{tpu_custom_call.1} parent=1 // pred_fallthru
      _
    // Predicated region
    $region34: #{tpu_custom_call.1} parent=1 // pred_check
      _
    $region35: #{tpu_custom_call.1} parent=1 // pred_check_branch
      %205 = sbr.rel (0) target = $region37
    $region36: #{tpu_custom_call.1} parent=1 // pred_region
      %206 = dma.done [#allocation4], 256
    $region37: #{tpu_custom_call.1} parent=1 // pred_fallthru
      _
    // Predicated region
    $region38: #{tpu_custom_call.1} parent=1 // pred_check
      _
    $region39: #{tpu_custom_call.1} parent=1 // pred_check_branch
      %208 = sbr.rel (0) target = $region41
    $region40: #{tpu_custom_call.1} parent=1 // pred_region
      %209 = dma.done [#allocation9], 256
    $region41: #{tpu_custom_call.1} parent=1 // pred_fallthru
      _
    // Predicated region
    $region42: #{tpu_custom_call.1} parent=1 // pred_check
      _
    $region43: #{tpu_custom_call.1} parent=1 // pred_check_branch
      %211 = sbr.rel (0) target = $region45
    $region44: #{tpu_custom_call.1} parent=1 // pred_region
      %212 = dma.done [#allocation9], 256
    $region45: #{tpu_custom_call.1} parent=1 // pred_fallthru
      _
    %213 = vsyncpa [#allocation3], 1
    %214 = vsyncpa [#allocation6], 1
    %215 = vsyncpa [#allocation4], 1
    %216 = vsyncpa [#allocation9], 1

</llo_original>
